<compile_context>
chip_gen: v6e
topology: v6e:2x2x1
jax: 0.10.0
libtpu: 0.0.40
codegen_flags: <defaults>
</compile_context>

<pallas_src>
import jax
import jax.numpy as jnp
from jax.experimental import pallas as pl
from jax.experimental.pallas import tpu as pltpu


def _cdiv(a: int, b: int) -> int:
    return -(-a // b)


def _round_up(a: int, b: int) -> int:
    return _cdiv(a, b) * b


def _pick_tile(dim: int, cap: int, align: int) -> int:
    """Largest tile <= cap (aligned) that minimizes padding waste for `dim`."""
    dim_a = max(_round_up(dim, align), align)
    n_blocks = _cdiv(dim_a, cap)
    return _round_up(_cdiv(dim_a, n_blocks), align)


def _pad2(a, rows: int, cols: int):
    return jnp.pad(a, ((0, rows - a.shape[0]), (0, cols - a.shape[1])))


# ---------------------------------------------------------------------------
# Kernels.  Output block is resident across the k axis (its index_map ignores k),
# so it doubles as the f32 accumulator: zero at k==0, += dot each step, bias at last k.
# ---------------------------------------------------------------------------

def _reparam_matmul_kernel(x_ref, wmu_ref, wpe_ref, b_ref, o_ref):
    """grid_m == 1 path: reparameterize the weight tile in-kernel (bf16 add, VALU)."""
    k = pl.program_id(2)

    @pl.when(k == 0)
    def _init():
        o_ref[...] = jnp.zeros_like(o_ref)

    # w = mu + softplus(rho) * eps  (the sigma*eps product is fused in the wrapper).
    w = wmu_ref[...] + wpe_ref[...]                                # (tk, tn) bf16
    o_ref[...] += jnp.dot(x_ref[...], w, preferred_element_type=jnp.float32)

    @pl.when(k == pl.num_programs(2) - 1)
    def _finalize():
        o_ref[...] += b_ref[...]                                   # (1, tn) f32 broadcast


def _fusedw_matmul_kernel(x_ref, w_ref, b_ref, o_ref):
    """grid_m > 1 path: weights are reparameterized once in the wrapper (bf16 stream)."""
    k = pl.program_id(2)

    @pl.when(k == 0)
    def _init():
        o_ref[...] = jnp.zeros_like(o_ref)

    o_ref[...] += jnp.dot(x_ref[...], w_ref[...], preferred_element_type=jnp.float32)

    @pl.when(k == pl.num_programs(2) - 1)
    def _finalize():
        o_ref[...] += b_ref[...]


# ---------------------------------------------------------------------------
# Wrapper
# ---------------------------------------------------------------------------

def bayesian_linear(x, weight_mu, weight_rho, weight_eps,
                    bias_mu, bias_rho, bias_eps,
                    *, tm_max=512, tn_max=512, tk_max=1024):
    """Pallas-backed forward of BayesianLinear.

    x: (..., in_features) float32
    weight_*: (out_features, in_features) float32
    bias_*: (out_features,) float32
    returns (..., out_features) float32
    """
    orig_shape = x.shape
    in_features = orig_shape[-1]
    out_features = weight_mu.shape[0]

    x2d = x.reshape(-1, in_features)
    batch = x2d.shape[0]

    # --- tile / grid selection -------------------------------------------------
    tm = _pick_tile(batch, tm_max, 16)          # 16: bf16 sublane packing for x
    tn = _pick_tile(out_features, tn_max, 128)
    tk = _pick_tile(in_features, tk_max, 128)
    M = _round_up(batch, tm)
    N = _round_up(out_features, tn)
    K = _round_up(in_features, tk)

    # v7x has 2 TensorCores: make sure the parallel (m, n) sub-grid has >= 2 blocks
    # whenever a tile can be split without adding padding.
    if (M // tm) * (N // tn) < 2:
        if tn % 256 == 0:
            tn //= 2
        elif tm % 32 == 0:
            tm //= 2

    grid = (M // tm, N // tn, K // tk)
    gm, gn, gk = grid

    # --- wrapper-side fusions (single pass each, f32 math, bf16/f32 outputs) ----
    sigma_w = jax.nn.softplus(weight_rho.astype(jnp.float32))
    bias_full = (bias_mu.astype(jnp.float32)
                 + jax.nn.softplus(bias_rho.astype(jnp.float32)) * bias_eps.astype(jnp.float32))

    x_p = _pad2(x2d.astype(jnp.bfloat16), M, K)
    b_p = _pad2(bias_full.reshape(1, -1), 1, N)                    # (1, N) f32

    # NOTE: for training loops, keep the parameters persistently in (in, out) layout to
    # avoid even these fused per-call transpose copies.
    if gm == 1:
        # Each weight tile is visited exactly once -> reparameterize in-kernel:
        # stream mu and (sigma*eps) as two bf16 arrays.
        wmu_p = _pad2(weight_mu.astype(jnp.float32).T.astype(jnp.bfloat16), K, N)
        wpe_p = _pad2((sigma_w * weight_eps.astype(jnp.float32)).T.astype(jnp.bfloat16), K, N)
        kernel = _reparam_matmul_kernel
        weight_inputs = (wmu_p, wpe_p)
        n_w_streams = 2
        extra_flops = K * N                     # in-kernel add
    else:
        # Weight tiles would be revisited gm times: precompute w = mu + sigma*eps once
        # (XLA fusion) and stream a single bf16 array into a matmul-only kernel.
        w_full = weight_mu.astype(jnp.float32) + sigma_w * weight_eps.astype(jnp.float32)
        w_p = _pad2(w_full.T.astype(jnp.bfloat16), K, N)
        kernel = _fusedw_matmul_kernel
        weight_inputs = (w_p,)
        n_w_streams = 1
        extra_flops = 0

    # --- specs -------------------------------------------------------------------
    x_spec = pl.BlockSpec((tm, tk), lambda m, n, k: (m, k))
    w_spec = pl.BlockSpec((tk, tn), lambda m, n, k: (k, n))
    b_spec = pl.BlockSpec((1, tn), lambda m, n, k: (0, n))
    o_spec = pl.BlockSpec((tm, tn), lambda m, n, k: (m, n))

    # HBM traffic including re-read factors (x once per n block, weights once per m block).
    cost = pl.CostEstimate(
        flops=2 * M * N * K + extra_flops + M * N,
        transcendentals=0,
        bytes_accessed=(gn * M * K * 2
                        + gm * n_w_streams * K * N * 2
                        + gm * gn * N * 4
                        + M * N * 4),
    )

    out = pl.pallas_call(
        kernel,
        out_shape=jax.ShapeDtypeStruct((M, N), jnp.float32),
        grid_spec=pltpu.PrefetchScalarGridSpec(
            num_scalar_prefetch=0,
            grid=grid,
            in_specs=[x_spec] + [w_spec] * n_w_streams + [b_spec],
            out_specs=o_spec,
        ),
        compiler_params=pltpu.CompilerParams(
            dimension_semantics=("parallel", "parallel", "arbitrary"),
            # Well above the actual footprint (~<10 MiB at these caps) and still inside
            # v7x's 64 MiB physical VMEM; gives v5e/v6e pipelining headroom.
            vmem_limit_bytes=48 * 1024 * 1024,
        ),
        cost_estimate=cost,
    )(x_p, *weight_inputs, b_p)

    out = out[:batch, :out_features]
    return out.reshape(orig_shape[:-1] + (out_features,))


if __name__ == "__main__":
    in_features = 32
    out_features = 16
    batch_shape = (2, 8)   # leading dims; flattened to B=16 inside the wrapper

    key = jax.random.PRNGKey(0)
    k_wmu, k_wrho, k_bmu, k_brho, k_x, k_weps, k_beps, k_x2 = jax.random.split(key, 8)

    # Deterministic "parameter init" matching the __init__ distributions.
    weight_mu = 0.1 * jax.random.normal(k_wmu, (out_features, in_features), jnp.float32)
    weight_rho = jax.random.uniform(k_wrho, (out_features, in_features), jnp.float32,
                                    minval=-3.0, maxval=-2.0)
    bias_mu = 0.1 * jax.random.normal(k_bmu, (out_features,), jnp.float32)
    bias_rho = jax.random.uniform(k_brho, (out_features,), jnp.float32,
                                  minval=-3.0, maxval=-2.0)

    # Forward-pass noise (PyTorch draws fresh N(0,1) each forward); explicit here so the
    # kernel output is verifiable against a deterministic pure-JAX reference.
    weight_eps = jax.random.normal(k_weps, (out_features, in_features), jnp.float32)
    bias_eps = jax.random.normal(k_beps, (out_features,), jnp.float32)

    x = jax.random.normal(k_x, batch_shape + (in_features,), jnp.float32)

    # Pure-JAX f32 reference.
    w_ref = weight_mu + jax.nn.softplus(weight_rho) * weight_eps
    b_ref = bias_mu + jax.nn.softplus(bias_rho) * bias_eps

    # Path 1: grid_m == 1 -> reparameterization fused into the kernel.
    y = jax.block_until_ready(
        bayesian_linear(x, weight_mu, weight_rho, weight_eps, bias_mu, bias_rho, bias_eps))
    y_ref = x @ w_ref.T + b_ref
    assert y.shape == batch_shape + (out_features,)
    # bf16 input/weight streams (f32 accumulation): tolerance reflects bf16 rounding.
    assert jnp.allclose(y, y_ref, atol=2e-2, rtol=2e-2), "reparam-path mismatch vs reference"

    # Path 2: force grid_m > 1 so the precomputed-weight (fused-w) path is exercised.
    x2 = jax.random.normal(k_x2, (48, in_features), jnp.float32)
    y2 = jax.block_until_ready(
        bayesian_linear(x2, weight_mu, weight_rho, weight_eps, bias_mu, bias_rho, bias_eps,
                        tm_max=16))
    y2_ref = x2 @ w_ref.T + b_ref
    assert y2.shape == (48, out_features)
    assert jnp.allclose(y2, y2_ref, atol=2e-2, rtol=2e-2), "fused-w-path mismatch vs reference"

    print("KERNEL_OK")
</pallas_src>

<mosaic_0001>
module attributes {stable_mosaic.version = 11 : i64} {
  func.func @_reparam_matmul_kernel(%arg0: i32, %arg1: i32, %arg2: i32, %arg3: memref<16x128xbf16, #tpu.memory_space<vmem>>, %arg4: memref<128x128xbf16, #tpu.memory_space<vmem>>, %arg5: memref<128x128xbf16, #tpu.memory_space<vmem>>, %arg6: memref<1x128xf32, #tpu.memory_space<vmem>>, %arg7: memref<16x128xf32, #tpu.memory_space<vmem>>) attributes {dimension_semantics = [#tpu.dimension_semantics<parallel>, #tpu.dimension_semantics<parallel>, #tpu.dimension_semantics<arbitrary>], iteration_bounds = array<i64: 1, 1, 1>, scalar_prefetch = 0 : i64, scratch_operands = 0 : i64, tpu.core_type = #tpu.core_type<tc>, window_params = [{transform_indices = @transform_0, window_bounds = array<i64: 16, 128>}, {transform_indices = @transform_1, window_bounds = array<i64: 128, 128>}, {transform_indices = @transform_2, window_bounds = array<i64: 128, 128>}, {transform_indices = @transform_3, window_bounds = array<i64: 1, 128>}, {transform_indices = @transform_4, window_bounds = array<i64: 16, 128>}]} {
    %c0_i32 = arith.constant 0 : i32
    %0 = arith.cmpi eq, %arg2, %c0_i32 : i32
    %1 = arith.extui %0 : i1 to i32
    %c0_i32_0 = arith.constant 0 : i32
    %2 = arith.cmpi ne, %1, %c0_i32_0 : i32
    scf.if %2 {
      %cst_12 = arith.constant 0.000000e+00 : f32
      %14 = vector.broadcast %cst_12 : f32 to vector<16x128xf32>
      %c0_13 = arith.constant 0 : index
      %c0_14 = arith.constant 0 : index
      %15 = vector.load %arg7[%c0_13, %c0_14] : memref<16x128xf32, #tpu.memory_space<vmem>>, vector<16x128xf32>
      tpu.vector_store %arg7[%c0_13, %c0_14], %14 {strides = array<i32>} : memref<16x128xf32, #tpu.memory_space<vmem>>, vector<16x128xf32>,
    } else {
    }
    %c0 = arith.constant 0 : index
    %c0_1 = arith.constant 0 : index
    %3 = vector.load %arg4[%c0, %c0_1] : memref<128x128xbf16, #tpu.memory_space<vmem>>, vector<128x128xbf16>
    %c0_2 = arith.constant 0 : index
    %c0_3 = arith.constant 0 : index
    %4 = vector.load %arg5[%c0_2, %c0_3] : memref<128x128xbf16, #tpu.memory_space<vmem>>, vector<128x128xbf16>
    %5 = arith.addf %3, %4 : vector<128x128xbf16>
    %c0_4 = arith.constant 0 : index
    %c0_5 = arith.constant 0 : index
    %6 = vector.load %arg7[%c0_4, %c0_5] : memref<16x128xf32, #tpu.memory_space<vmem>>, vector<16x128xf32>
    %c0_6 = arith.constant 0 : index
    %c0_7 = arith.constant 0 : index
    %7 = vector.load %arg3[%c0_6, %c0_7] : memref<16x128xbf16, #tpu.memory_space<vmem>>, vector<16x128xbf16>
    %cst = arith.constant dense<0.000000e+00> : vector<16x128xf32>
    %8 = tpu.matmul %7, %5, %cst {dimension_numbers = #tpu.dot_dimension_numbers<[1], [0], [0], [1], [0, 0, 1, 1], [], []>} : vector<16x128xbf16>, vector<128x128xbf16>, vector<16x128xf32> -> vector<16x128xf32>
    %9 = arith.addf %6, %8 : vector<16x128xf32>
    %c0_8 = arith.constant 0 : index
    %c0_9 = arith.constant 0 : index
    %10 = vector.load %arg7[%c0_8, %c0_9] : memref<16x128xf32, #tpu.memory_space<vmem>>, vector<16x128xf32>
    tpu.vector_store %arg7[%c0_8, %c0_9], %9 {strides = array<i32>} : memref<16x128xf32, #tpu.memory_space<vmem>>, vector<16x128xf32>,
    %c0_i32_10 = arith.constant 0 : i32
    %11 = arith.cmpi eq, %arg2, %c0_i32_10 : i32
    %12 = arith.extui %11 : i1 to i32
    %c0_i32_11 = arith.constant 0 : i32
    %13 = arith.cmpi ne, %12, %c0_i32_11 : i32
    scf.if %13 {
      %c0_12 = arith.constant 0 : index
      %c0_13 = arith.constant 0 : index
      %14 = vector.load %arg7[%c0_12, %c0_13] : memref<16x128xf32, #tpu.memory_space<vmem>>, vector<16x128xf32>
      %c0_14 = arith.constant 0 : index
      %c0_15 = arith.constant 0 : index
      %15 = vector.load %arg6[%c0_14, %c0_15] : memref<1x128xf32, #tpu.memory_space<vmem>>, vector<1x128xf32>
      %16 = vector.broadcast %15 : vector<1x128xf32> to vector<16x128xf32>
      %17 = arith.addf %14, %16 : vector<16x128xf32>
      %c0_16 = arith.constant 0 : index
      %c0_17 = arith.constant 0 : index
      %18 = vector.load %arg7[%c0_16, %c0_17] : memref<16x128xf32, #tpu.memory_space<vmem>>, vector<16x128xf32>
      tpu.vector_store %arg7[%c0_16, %c0_17], %17 {strides = array<i32>} : memref<16x128xf32, #tpu.memory_space<vmem>>, vector<16x128xf32>,
    } else {
    }
    return
  }
  func.func @transform_0(%arg0: i32, %arg1: i32, %arg2: i32) -> (i32, i32) {
    %c0_i32 = arith.constant 0 : i32
    return %arg0, %arg2 : i32, i32
  }
  func.func @transform_1(%arg0: i32, %arg1: i32, %arg2: i32) -> (i32, i32) {
    %c0_i32 = arith.constant 0 : i32
    return %arg2, %arg1 : i32, i32
  }
  func.func @transform_2(%arg0: i32, %arg1: i32, %arg2: i32) -> (i32, i32) {
    %c0_i32 = arith.constant 0 : i32
    return %arg2, %arg1 : i32, i32
  }
  func.func @transform_3(%arg0: i32, %arg1: i32, %arg2: i32) -> (i32, i32) {
    %c0_i32 = arith.constant 0 : i32
    %c0_i32_0 = arith.constant 0 : i32
    return %c0_i32, %arg1 : i32, i32
  }
  func.func @transform_4(%arg0: i32, %arg1: i32, %arg2: i32) -> (i32, i32) {
    %c0_i32 = arith.constant 0 : i32
    return %arg0, %arg1 : i32, i32
  }
}

</mosaic_0001>

<llo_original>
// kernel: tpu_custom_call.1
$region0: #{tpu_custom_call.1}
  #allocation0 [shape = 'u32[]', space=smem, size = 0x4, offset = 0x4, fixed_abs, tag = 'smem constant byte address 0x4 - core index']
  #allocation1 [shape = 'u32[144,128]{1,0:T(1,128)}', space=vmem, size = 0x12000, scoped, tag = 'internal scratch']
  %s0 = inlined_call_operand.hbm [shape: bf16[16,128], index: 0, kind: input, shape index: {}]
  %s1 = inlined_call_operand.hbm [shape: bf16[128,128], index: 1, kind: input, shape index: {}]
  %s2 = inlined_call_operand.hbm [shape: bf16[128,128], index: 2, kind: input, shape index: {}]
  %s3 = inlined_call_operand.vmem [shape: f32[1,128], index: 3, kind: input, shape index: {}]
  %s4 = inlined_call_operand.hbm [shape: f32[16,128], index: 4, kind: output, shape index: {}]
  %s5 = sld [smem:[#allocation0]]
  $region46: #{tpu_custom_call.1} parent=0
    _
  %s7 = ssub.s32 1, %s5
  %s8 = scalar_select 0, %s7, %s5
  $region1: #{tpu_custom_call.1} parent=0
    #allocation2 [shape = 'u8[4096]{0}', space=vmem, size = 0x1000, scoped, tag = 'input window, operand 0, single buffered']
    #allocation3 [shape = 's32[1]{0}', space=sflag, size = 0x4, scoped, tag = 'scoped memory for tpu_custom_call.1']
    #allocation4 [shape = 's32[1]{0}', space=sflag, size = 0x4, scoped, tag = 'scoped memory for tpu_custom_call.1']
    #allocation5 [shape = 'u8[32768]{0}', space=vmem, size = 0x8000, scoped, tag = 'input window, operand 1, single buffered']
    #allocation6 [shape = 's32[1]{0}', space=sflag, size = 0x4, scoped, tag = 'scoped memory for tpu_custom_call.1']
    #allocation7 [shape = 'u8[32768]{0}', space=vmem, size = 0x8000, scoped, tag = 'input window, operand 2, single buffered']
    #allocation8 [shape = 'u8[8192]{0}', space=vmem, size = 0x2000, scoped, tag = 'output window, operand 0, single buffered']
    %9 = vsyncpa [#allocation3], 0
    %10 = vsyncpa [#allocation6], 0
    %11 = vsyncpa [#allocation4], 0
    // Predicated region
    $region2: #{tpu_custom_call.1} parent=1 // pred_check
      _
    $region3: #{tpu_custom_call.1} parent=1 // pred_check_branch
      %13 = sbr.rel (0) target = $region5
    $region4: #{tpu_custom_call.1} parent=1 // pred_region
      %s15 = ssub.s32 128, 128
      %16 = vsyncadd [#allocation3], %s15
      %s17 = sshll.u32 [#allocation2], 4
      %s18 = int_to_ptr.vmem [resolvable:$true] %s17
      %23 = dma.hbm_to_vmem [thread:$0]  %s0, 128, %s18, [#allocation3], 64, 64, 4
    $region5: #{tpu_custom_call.1} parent=1 // pred_fallthru
      _
    // Predicated region
    $region6: #{tpu_custom_call.1} parent=1 // pred_check
      _
    $region7: #{tpu_custom_call.1} parent=1 // pred_check_branch
      %25 = sbr.rel (0) target = $region9
    $region8: #{tpu_custom_call.1} parent=1 // pred_region
      %s27 = ssub.s32 1024, 1024
      %28 = vsyncadd [#allocation6], %s27
      %s29 = sshll.u32 [#allocation5], 4
      %s30 = int_to_ptr.vmem [resolvable:$true] %s29
      %35 = dma.hbm_to_vmem [thread:$0]  %s1, 1024, %s30, [#allocation6], 64, 64, 4
    $region9: #{tpu_custom_call.1} parent=1 // pred_fallthru
      _
    // Predicated region
    $region10: #{tpu_custom_call.1} parent=1 // pred_check
      _
    $region11: #{tpu_custom_call.1} parent=1 // pred_check_branch
      %37 = sbr.rel (0) target = $region13
    $region12: #{tpu_custom_call.1} parent=1 // pred_region
      %s39 = ssub.s32 1024, 1024
      %40 = vsyncadd [#allocation6], %s39
      %s41 = sshll.u32 [#allocation7], 4
      %s42 = int_to_ptr.vmem [resolvable:$true] %s41
      %47 = dma.hbm_to_vmem [thread:$0]  %s2, 1024, %s42, [#allocation6], 64, 64, 4
    $region13: #{tpu_custom_call.1} parent=1 // pred_fallthru
      _
    // Predicated region
    $region14: #{tpu_custom_call.1} parent=1 // pred_check
      _
    $region15: #{tpu_custom_call.1} parent=1 // pred_check_branch
      %49 = sbr.rel (0) target = $region17
    $region16: #{tpu_custom_call.1} parent=1 // pred_region
      _
    $region17: #{tpu_custom_call.1} parent=1 // pred_fallthru
      _
    // Predicated region
    $region18: #{tpu_custom_call.1} parent=1 // pred_check
      _
    $region19: #{tpu_custom_call.1} parent=1 // pred_check_branch
      %51 = sbr.rel (0) target = $region21
    $region20: #{tpu_custom_call.1} parent=1 // pred_region
      %52 = dma.done [#allocation3], 128
    $region21: #{tpu_custom_call.1} parent=1 // pred_fallthru
      _
    // Predicated region
    $region22: #{tpu_custom_call.1} parent=1 // pred_check
      _
    $region23: #{tpu_custom_call.1} parent=1 // pred_check_branch
      %54 = sbr.rel (0) target = $region25
    $region24: #{tpu_custom_call.1} parent=1 // pred_region
      %55 = dma.done [#allocation6], 1024
    $region25: #{tpu_custom_call.1} parent=1 // pred_fallthru
      _
    // Predicated region
    $region26: #{tpu_custom_call.1} parent=1 // pred_check
      _
    $region27: #{tpu_custom_call.1} parent=1 // pred_check_branch
      %57 = sbr.rel (0) target = $region29
    $region28: #{tpu_custom_call.1} parent=1 // pred_region
      %58 = dma.done [#allocation6], 1024
    $region29: #{tpu_custom_call.1} parent=1 // pred_fallthru
      _
    %p60 = scmp.eq.s32.totalorder 0, 0
    // Predicated region
    $region30: #{tpu_custom_call.1} parent=1 // pred_check
      %p61 = pneg %p60
    $region31: #{tpu_custom_call.1} parent=1 // pred_check_branch
      %63 = sbr.rel (%p61) target = $region33
    $region32: #{tpu_custom_call.1} parent=1 // pred_region
      %64 = vst [vmem:[#allocation8] sm:$0xff] 0.0
      %65 = vst [vmem:[#allocation8 + $0x8] sm:$0xff] 0.0
    $region33: #{tpu_custom_call.1} parent=1 // pred_fallthru
      _
    %v66 = vld [vmem:[#allocation5] sm:$0xf]
    %v67 = vld [vmem:[#allocation5 + $0x4] sm:$0xf]
    %v68 = vld [vmem:[#allocation5 + $0x8] sm:$0xf]
    %v69 = vld [vmem:[#allocation5 + $0xc] sm:$0xf]
    %v70 = vld [vmem:[#allocation5 + $0x10] sm:$0xf]
    %v71 = vld [vmem:[#allocation5 + $0x14] sm:$0xf]
    %v72 = vld [vmem:[#allocation5 + $0x18] sm:$0xf]
    %v73 = vld [vmem:[#allocation5 + $0x1c] sm:$0xf]
    %v74 = vld [vmem:[#allocation5 + $0x20] sm:$0xf]
    %v75 = vld [vmem:[#allocation5 + $0x24] sm:$0xf]
    %v76 = vld [vmem:[#allocation5 + $0x28] sm:$0xf]
    %v77 = vld [vmem:[#allocation5 + $0x2c] sm:$0xf]
    %v78 = vld [vmem:[#allocation5 + $0x30] sm:$0xf]
    %v79 = vld [vmem:[#allocation5 + $0x34] sm:$0xf]
    %v80 = vld [vmem:[#allocation5 + $0x38] sm:$0xf]
    %v81 = vld [vmem:[#allocation5 + $0x3c] sm:$0xf]
    %v82 = vld [vmem:[#allocation7] sm:$0xf]
    %v83 = vld [vmem:[#allocation7 + $0x4] sm:$0xf]
    %v84 = vld [vmem:[#allocation7 + $0x8] sm:$0xf]
    %v85 = vld [vmem:[#allocation7 + $0xc] sm:$0xf]
    %v86 = vld [vmem:[#allocation7 + $0x10] sm:$0xf]
    %v87 = vld [vmem:[#allocation7 + $0x14] sm:$0xf]
    %v88 = vld [vmem:[#allocation7 + $0x18] sm:$0xf]
    %v89 = vld [vmem:[#allocation7 + $0x1c] sm:$0xf]
    %v90 = vld [vmem:[#allocation7 + $0x20] sm:$0xf]
    %v91 = vld [vmem:[#allocation7 + $0x24] sm:$0xf]
    %v92 = vld [vmem:[#allocation7 + $0x28] sm:$0xf]
    %v93 = vld [vmem:[#allocation7 + $0x2c] sm:$0xf]
    %v94 = vld [vmem:[#allocation7 + $0x30] sm:$0xf]
    %v95 = vld [vmem:[#allocation7 + $0x34] sm:$0xf]
    %v96 = vld [vmem:[#allocation7 + $0x38] sm:$0xf]
    %v97 = vld [vmem:[#allocation7 + $0x3c] sm:$0xf]
    %v98 = vadd.bf16 %v66, %v82
    %v99 = vadd.bf16 %v67, %v83
    %v100 = vadd.bf16 %v68, %v84
    %v101 = vadd.bf16 %v69, %v85
    %v102 = vadd.bf16 %v70, %v86
    %v103 = vadd.bf16 %v71, %v87
    %v104 = vadd.bf16 %v72, %v88
    %v105 = vadd.bf16 %v73, %v89
    %v106 = vadd.bf16 %v74, %v90
    %v107 = vadd.bf16 %v75, %v91
    %v108 = vadd.bf16 %v76, %v92
    %v109 = vadd.bf16 %v77, %v93
    %v110 = vadd.bf16 %v78, %v94
    %v111 = vadd.bf16 %v79, %v95
    %v112 = vadd.bf16 %v80, %v96
    %v113 = vadd.bf16 %v81, %v97
    %v114 = vld [vmem:[#allocation8] sm:$0xff]
    %v115 = vld [vmem:[#allocation8 + $0x8] sm:$0xff]
    %v116 = vld [vmem:[#allocation2] sm:$0xf]
    %v117 = vld [vmem:[#allocation2 + $0x4] sm:$0xf]
    %v120 = vunpack.c.l.b16 %v116
    %v121 = vunpack.c.l.b16 %v117
    %v122 = vpack.c.b16 %v121, %v120
    %v140 = vunpack.c.l.b16 %v98
    %v141 = vunpack.c.l.b16 %v99
    %v142 = vunpack.c.l.b16 %v100
    %v143 = vunpack.c.l.b16 %v101
    %v144 = vunpack.c.l.b16 %v102
    %v145 = vunpack.c.l.b16 %v103
    %v146 = vunpack.c.l.b16 %v104
    %v147 = vunpack.c.l.b16 %v105
    %v148 = vunpack.c.l.b16 %v106
    %v149 = vunpack.c.l.b16 %v107
    %v150 = vunpack.c.l.b16 %v108
    %v151 = vunpack.c.l.b16 %v109
    %v152 = vunpack.c.l.b16 %v110
    %v153 = vunpack.c.l.b16 %v111
    %v154 = vunpack.c.l.b16 %v112
    %v155 = vunpack.c.l.b16 %v113
    %v156 = vpack.c.b16 %v141, %v140
    %v157 = vpack.c.b16 %v143, %v142
    %v158 = vpack.c.b16 %v145, %v144
    %v159 = vpack.c.b16 %v147, %v146
    %v160 = vpack.c.b16 %v149, %v148
    %v161 = vpack.c.b16 %v151, %v150
    %v162 = vpack.c.b16 %v153, %v152
    %v163 = vpack.c.b16 %v155, %v154
    %172 = vmatprep.subr.bf16.mxu0 0
    %173 = vmatpush1.bf16.msra.mxu0 %v163
    %174 = vmatprep.subr.bf16.mxu0 0
    %175 = vmatpush1.bf16.msra.mxu0 %v162
    %176 = vmatprep.subr.bf16.mxu0 0
    %177 = vmatpush1.bf16.msra.mxu0 %v161
    %178 = vmatprep.subr.bf16.mxu0 0
    %179 = vmatpush1.bf16.msra.mxu0 %v160
    %180 = vmatprep.subr.bf16.mxu0 0
    %181 = vmatpush1.bf16.msra.mxu0 %v159
    %182 = vmatprep.subr.bf16.mxu0 0
    %183 = vmatpush1.bf16.msra.mxu0 %v158
    %184 = vmatprep.subr.bf16.mxu0 0
    %185 = vmatpush1.bf16.msra.mxu0 %v157
    %186 = vmatprep.subr.bf16.mxu0 0
    %187 = vmatpush1.bf16.msra.mxu0 %v156
    %188 = vmatprep.subr.bf16.mxu0 0
    %189 = vmatpush2.bf16.msra.mxu0 0
    %190 = vmatprep.subr.bf16.mxu0 0
    %191 = vmatpush2.bf16.msra.mxu0 0
    %192 = vmatprep.subr.bf16.mxu0 0
    %193 = vmatpush2.bf16.msra.mxu0 0
    %194 = vmatprep.subr.bf16.mxu0 0
    %195 = vmatpush2.bf16.msra.mxu0 0
    %196 = vmatprep.subr.bf16.mxu0 0
    %197 = vmatpush2.bf16.msra.mxu0 0
    %198 = vmatprep.subr.bf16.mxu0 0
    %199 = vmatpush2.bf16.msra.mxu0 0
    %200 = vmatprep.subr.bf16.mxu0 0
    %201 = vmatpush2.bf16.msra.mxu0 0
    %202 = vmatprep.subr.bf16.mxu0 0
    %203 = vmatpush2.bf16.msra.mxu0 0
    %204 = vmatprep.mubr.bf16.mxu0 0
    %205 = vmatmul.mubr.bf16.gmra.mxu0 %v122
    %v206 = vpop.f32.mrf.mxu0
    %v207 = vadd.f32 0.0, %v206
    %v208 = vpop.f32.mrf.mxu0
    %v209 = vpop.f32.mrf.mxu0
    %v210 = vadd.f32 0.0, %v209
    %v211 = vpop.f32.mrf.mxu0
    %212 = vdwg.mxu0
    %v213 = vadd.f32 %v114, %v207
    %v214 = vadd.f32 %v115, %v210
    %215 = vst [vmem:[#allocation8] sm:$0xff] %v213
    %216 = vst [vmem:[#allocation8 + $0x8] sm:$0xff] %v214
    // Predicated region
    $region34: #{tpu_custom_call.1} parent=1 // pred_check
      %p217 = pneg %p60
    $region35: #{tpu_custom_call.1} parent=1 // pred_check_branch
      %219 = sbr.rel (%p217) target = $region37
    $region36: #{tpu_custom_call.1} parent=1 // pred_region
      %v220 = vld [vmem:[#allocation8] sm:$0xff]
      %v221 = vld [vmem:[#allocation8 + $0x8] sm:$0xff]
      %v222 = vld [vmem:[%s3] sm:$0x1]
      %v224 = vlaneseq
      %v225 = vshrl.u32 %v224, 7
      %v226 = vsub.s32 0, %v225
      %v227 = vrot.slane %v222, %v226
      %v229 = vadd.f32 %v220, %v227
      %v230 = vadd.f32 %v221, %v227
      %231 = vst [vmem:[#allocation8] sm:$0xff] %v229
      %232 = vst [vmem:[#allocation8 + $0x8] sm:$0xff] %v230
    $region37: #{tpu_custom_call.1} parent=1 // pred_fallthru
      _
    // Predicated region
    $region38: #{tpu_custom_call.1} parent=1 // pred_check
      _
    $region39: #{tpu_custom_call.1} parent=1 // pred_check_branch
      %234 = sbr.rel (0) target = $region41
    $region40: #{tpu_custom_call.1} parent=1 // pred_region
      %s236 = ssub.s32 256, 256
      %237 = vsyncadd [#allocation4], %s236
      %s238 = sshll.u32 [#allocation8], 4
      %s239 = int_to_ptr.vmem [resolvable:$true] %s238
      %244 = dma.vmem_to_hbm [thread:$0]  %s239, 256, %s4, [#allocation4], 128, 128, 8
    $region41: #{tpu_custom_call.1} parent=1 // pred_fallthru
      _
    // Predicated region
    $region42: #{tpu_custom_call.1} parent=1 // pred_check
      _
    $region43: #{tpu_custom_call.1} parent=1 // pred_check_branch
      %246 = sbr.rel (0) target = $region45
    $region44: #{tpu_custom_call.1} parent=1 // pred_region
      %247 = dma.done [#allocation4], 256
    $region45: #{tpu_custom_call.1} parent=1 // pred_fallthru
      _
    %248 = vsyncpa [#allocation3], 1
    %249 = vsyncpa [#allocation6], 1
    %250 = vsyncpa [#allocation4], 1

</llo_original>
